<compile_context>
chip_gen: v6e
topology: v6e:2x2x1
jax: 0.10.0
libtpu: 0.0.40
codegen_flags: <defaults>
</compile_context>

<pallas_src>
import functools
import math

import jax
import jax.numpy as jnp
from jax.experimental import pallas as pl
from jax.experimental.pallas import tpu as pltpu
import numpy as np


def _round_up(n, m):
    return ((n + m - 1) // m) * m


def _lstm_chunk_kernel(x_ref, wih_ref, whh_ref, bias_ref, out_ref,
                       pre_scr, h_scr, c_scr, *, hidden, chunk, bt):
    """One grid step == `chunk` timesteps of the LSTM recurrence for one batch tile.

    x_ref    : (chunk*BT, F)   chunk of inputs, rows ordered (t_local, b_local)
    wih_ref  : (F, 4H)  f32    gate-stacked input weights   (VMEM-resident)
    whh_ref  : (H, 4H)  bf16   gate-stacked recurrent weights (VMEM-resident)
    bias_ref : (1, 4H)  f32    b_ih + b_hh
    out_ref  : (BT, chunk*H)   hidden states, lane-packed as t_local*H + h
    pre_scr  : (chunk*BT, 4H)  per-chunk pre-activations (VMEM scratch)
    h_scr    : (BT, H) f32     carried hidden state (persists across grid steps)
    c_scr    : (BT, H) f32     carried cell state   (persists across grid steps)
    """
    H = hidden

    @pl.when(pl.program_id(1) == 0)          # new batch tile -> reset state
    def _():
        h_scr[...] = jnp.zeros_like(h_scr)
        c_scr[...] = jnp.zeros_like(c_scr)

    # Per-chunk input projection + bias: one (chunk*BT, F) x (F, 4H) matmul.
    # Off the serial path; hides under the latency-bound recurrence.
    pre_scr[...] = (
        jnp.dot(x_ref[...], wih_ref[...], preferred_element_type=jnp.float32)
        + bias_ref[...]
    )

    whh = whh_ref[...]  # (H, 4H) bf16 — loaded once per chunk, reused every step

    h = h_scr[...]
    c = c_scr[...]
    # Static Python unroll: all sublane/lane offsets below are compile-time constants.
    for t in range(chunk):
        # Serial critical path is only the bf16 h_prev @ W_hh matmul.
        gates = pre_scr[t * bt:(t + 1) * bt, :] + jnp.dot(
            h.astype(whh.dtype), whh, preferred_element_type=jnp.float32)
        # NOTE: the 32-lane gate slices may lower to lane selects; EUP/XLU slots
        # have slack in this latency-bound loop, so kept simple.
        i_g = jax.nn.sigmoid(gates[:, 0 * H:1 * H])
        f_g = jax.nn.sigmoid(gates[:, 1 * H:2 * H])
        g_g = jnp.tanh(gates[:, 2 * H:3 * H])
        o_g = jax.nn.sigmoid(gates[:, 3 * H:4 * H])
        c = f_g * c + i_g * g_g
        h = o_g * jnp.tanh(c)
        # Lane-packed store: timestep t occupies lanes [t*H, (t+1)*H).
        out_ref[:, t * H:(t + 1) * H] = h.astype(out_ref.dtype)

    h_scr[...] = h
    c_scr[...] = c


def lstm_forward_pallas(x_btf, w_ih, w_hh, b_ih, b_hh):
    """x_btf: (B, T, F) batch_first input (matching PyTorch).
    w_ih: (4H, F), w_hh: (4H, H), b_ih/b_hh: (4H,) — PyTorch parameter layout.
    Returns (B, T, H)."""
    B, T, F = x_btf.shape
    H = w_hh.shape[1]
    G = 4 * H

    # Gate-stacked, matmul-friendly parameter layout (gates along lanes: i,f,g,o).
    wih_all = jnp.transpose(w_ih).astype(jnp.float32)        # (F, 4H)
    whh_all = jnp.transpose(w_hh).astype(jnp.bfloat16)       # (H, 4H), serial path -> bf16
    bias = (b_ih + b_hh).astype(jnp.float32).reshape(1, G)   # (1, 4H)

    # ---- tiling --------------------------------------------------------------
    # Chunk of timesteps per grid step; chosen so the packed output block lane
    # width chunk*H is a multiple of 128 (lane-dense stores + DMA).
    lane_mult = 128 // math.gcd(H, 128)
    TC = _round_up(min(max(T, 1), 32), lane_mult)
    Tp = _round_up(T, TC)
    n_chunks = Tp // TC

    # Batch: pad to the f32 sublane tile (8); tile large batches at 128 rows so a
    # leading 'parallel' grid axis can shard tiles across TensorCores (v7x).
    if B <= 128:
        BT = _round_up(max(B, 8), 8)
    else:
        BT = 128
    Bp = _round_up(max(B, 8), BT)
    n_btiles = Bp // BT

    # ---- arrange x so the kernel needs no in-kernel reshape -------------------
    # (B, T, F) -> time-major padded (Tp, Bp, F) -> (n_chunks, n_btiles, TC*BT, F)
    # (one cheap HBM pass over x; replaces the old 8x-larger (T,B,4H) intermediate)
    x_tm = jnp.transpose(x_btf.astype(jnp.float32), (1, 0, 2))
    x_tm = jnp.pad(x_tm, ((0, Tp - T), (0, Bp - B), (0, 0)))
    x_arr = x_tm.reshape(n_chunks, TC, n_btiles, BT, F)
    x_arr = jnp.transpose(x_arr, (0, 2, 1, 3, 4)).reshape(n_chunks, n_btiles, TC * BT, F)

    kernel = functools.partial(_lstm_chunk_kernel, hidden=H, chunk=TC, bt=BT)

    # NOTE: at large H on v7x (64 MiB VMEM), consider bf16 x / smaller TC; the
    # resident weight blocks here are tiny (<=64 KiB) so defaults are fine.
    out = pl.pallas_call(
        kernel,
        out_shape=jax.ShapeDtypeStruct((Bp, Tp * H), x_btf.dtype),
        grid_spec=pltpu.PrefetchScalarGridSpec(
            num_scalar_prefetch=0,
            grid=(n_btiles, n_chunks),            # (parallel batch tiles, serial time)
            in_specs=[
                pl.BlockSpec((None, None, TC * BT, F), lambda b, c: (c, b, 0, 0)),
                pl.BlockSpec((F, G), lambda b, c: (0, 0)),    # W_ih (resident)
                pl.BlockSpec((H, G), lambda b, c: (0, 0)),    # W_hh (resident, bf16)
                pl.BlockSpec((1, G), lambda b, c: (0, 0)),    # bias
            ],
            out_specs=pl.BlockSpec((BT, TC * H), lambda b, c: (b, c)),
            scratch_shapes=[
                pltpu.VMEM((TC * BT, G), jnp.float32),        # per-chunk pre-acts
                pltpu.VMEM((BT, H), jnp.float32),             # h carry
                pltpu.VMEM((BT, H), jnp.float32),             # c carry
            ],
        ),
        compiler_params=pltpu.CompilerParams(
            dimension_semantics=("parallel", "arbitrary"),    # time is sequential
        ),
    )(x_arr, wih_all, whh_all, bias)

    # Lanes are packed as t*H + h, so batch-first output is a free reshape — no
    # final transpose pass over HBM.  Padding rows/steps are sliced off.
    return out.reshape(Bp, Tp, H)[:B, :T, :]


def lstm_forward_reference(x_btf, w_ih, w_hh, b_ih, b_hh):
    """Pure-JAX f32 reference (lax.scan) for correctness check."""
    B, T, F = x_btf.shape
    H = w_hh.shape[1]
    bias = b_ih + b_hh

    def step(carry, x_t):
        h, c = carry
        gates = x_t @ w_ih.T + h @ w_hh.T + bias       # (B, 4H)
        i_g = jax.nn.sigmoid(gates[:, 0 * H:1 * H])
        f_g = jax.nn.sigmoid(gates[:, 1 * H:2 * H])
        g_g = jnp.tanh(gates[:, 2 * H:3 * H])
        o_g = jax.nn.sigmoid(gates[:, 3 * H:4 * H])
        c_new = f_g * c + i_g * g_g
        h_new = o_g * jnp.tanh(c_new)
        return (h_new, c_new), h_new

    h0 = jnp.zeros((B, H), jnp.float32)
    c0 = jnp.zeros((B, H), jnp.float32)
    _, out = jax.lax.scan(step, (h0, c0), jnp.transpose(x_btf, (1, 0, 2)))
    return jnp.transpose(out, (1, 0, 2))


if __name__ == "__main__":
    # Small shapes consistent with the module's forward: (batch, seq, input_features)
    B, T, F, H = 2, 8, 16, 32

    key = jax.random.PRNGKey(0)
    kx, k1, k2, k3, k4 = jax.random.split(key, 5)

    x = jax.random.normal(kx, (B, T, F), dtype=jnp.float32)

    # Deterministic parameter init mirroring nn.LSTM shapes:
    #   weight_ih_l0: (4H, F), weight_hh_l0: (4H, H), bias_ih_l0/bias_hh_l0: (4H,)
    bound = 1.0 / np.sqrt(H)
    w_ih = jax.random.uniform(k1, (4 * H, F), minval=-bound, maxval=bound, dtype=jnp.float32)
    w_hh = jax.random.uniform(k2, (4 * H, H), minval=-bound, maxval=bound, dtype=jnp.float32)
    b_ih = jax.random.uniform(k3, (4 * H,), minval=-bound, maxval=bound, dtype=jnp.float32)
    b_hh = jax.random.uniform(k4, (4 * H,), minval=-bound, maxval=bound, dtype=jnp.float32)

    out = lstm_forward_pallas(x, w_ih, w_hh, b_ih, b_hh)
    out = jax.block_until_ready(out)

    ref = jax.block_until_ready(lstm_forward_reference(x, w_ih, w_hh, b_ih, b_hh))
    # Tolerance reflects bf16 recurrent weights on the MXU serial path (f32 accumulate).
    np.testing.assert_allclose(np.asarray(out), np.asarray(ref), rtol=2e-2, atol=2e-2)
    assert out.shape == (B, T, H)

    print("KERNEL_OK")
</pallas_src>

<mosaic_0001>
module attributes {stable_mosaic.version = 11 : i64} {
  func.func @_lstm_chunk_kernel(%arg0: i32, %arg1: i32, %arg2: memref<1x1x64x16xf32, #tpu.memory_space<vmem>>, %arg3: memref<16x128xf32, #tpu.memory_space<vmem>>, %arg4: memref<32x128xbf16, #tpu.memory_space<vmem>>, %arg5: memref<1x128xf32, #tpu.memory_space<vmem>>, %arg6: memref<8x256xf32, #tpu.memory_space<vmem>>, %arg7: memref<64x128xf32, #tpu.memory_space<vmem>>, %arg8: memref<8x32xf32, #tpu.memory_space<vmem>>, %arg9: memref<8x32xf32, #tpu.memory_space<vmem>>) attributes {dimension_semantics = [#tpu.dimension_semantics<parallel>, #tpu.dimension_semantics<arbitrary>], iteration_bounds = array<i64: 1, 1>, scalar_prefetch = 0 : i64, scratch_operands = 3 : i64, tpu.core_type = #tpu.core_type<tc>, window_params = [{transform_indices = @transform_0, window_bounds = array<i64: 1, 1, 64, 16>}, {pipeline_mode = #tpu.pipeline_mode<synchronous>, transform_indices = @transform_1, window_bounds = array<i64: 16, 128>}, {pipeline_mode = #tpu.pipeline_mode<synchronous>, transform_indices = @transform_2, window_bounds = array<i64: 32, 128>}, {pipeline_mode = #tpu.pipeline_mode<synchronous>, transform_indices = @transform_3, window_bounds = array<i64: 1, 128>}, {transform_indices = @transform_4, window_bounds = array<i64: 8, 256>}]} {
    %c0_i32 = arith.constant 0 : i32
    %0 = arith.cmpi eq, %arg1, %c0_i32 : i32
    %1 = arith.extui %0 : i1 to i32
    %c0_i32_0 = arith.constant 0 : i32
    %2 = arith.cmpi ne, %1, %c0_i32_0 : i32
    scf.if %2 {
      %cst_71 = arith.constant 0.000000e+00 : f32
      %256 = vector.broadcast %cst_71 : f32 to vector<8x32xf32>
      %c0_72 = arith.constant 0 : index
      %c0_73 = arith.constant 0 : index
      %257 = vector.load %arg8[%c0_72, %c0_73] : memref<8x32xf32, #tpu.memory_space<vmem>>, vector<8x32xf32>
      tpu.vector_store %arg8[%c0_72, %c0_73], %256 {strides = array<i32>} : memref<8x32xf32, #tpu.memory_space<vmem>>, vector<8x32xf32>,
      %cst_74 = arith.constant 0.000000e+00 : f32
      %258 = vector.broadcast %cst_74 : f32 to vector<8x32xf32>
      %c0_75 = arith.constant 0 : index
      %c0_76 = arith.constant 0 : index
      %259 = vector.load %arg9[%c0_75, %c0_76] : memref<8x32xf32, #tpu.memory_space<vmem>>, vector<8x32xf32>
      tpu.vector_store %arg9[%c0_75, %c0_76], %258 {strides = array<i32>} : memref<8x32xf32, #tpu.memory_space<vmem>>, vector<8x32xf32>,
    } else {
    }
    %c0 = arith.constant 0 : index
    %c0_1 = arith.constant 0 : index
    %c0_2 = arith.constant 0 : index
    %c0_3 = arith.constant 0 : index
    %3 = vector.load %arg2[%c0, %c0_1, %c0_2, %c0_3] : memref<1x1x64x16xf32, #tpu.memory_space<vmem>>, vector<1x1x64x16xf32>
    %4 = vector.shape_cast %3 : vector<1x1x64x16xf32> to vector<64x16xf32>
    %c0_4 = arith.constant 0 : index
    %c0_5 = arith.constant 0 : index
    %5 = vector.load %arg3[%c0_4, %c0_5] : memref<16x128xf32, #tpu.memory_space<vmem>>, vector<16x128xf32>
    %cst = arith.constant dense<0.000000e+00> : vector<64x128xf32>
    %6 = tpu.matmul %4, %5, %cst {dimension_numbers = #tpu.dot_dimension_numbers<[1], [0], [0], [1], [0, 0, 1, 1], [], []>} : vector<64x16xf32>, vector<16x128xf32>, vector<64x128xf32> -> vector<64x128xf32>
    %c0_6 = arith.constant 0 : index
    %c0_7 = arith.constant 0 : index
    %7 = vector.load %arg5[%c0_6, %c0_7] : memref<1x128xf32, #tpu.memory_space<vmem>>, vector<1x128xf32>
    %8 = vector.broadcast %7 : vector<1x128xf32> to vector<64x128xf32>
    %9 = arith.addf %6, %8 : vector<64x128xf32>
    %c0_8 = arith.constant 0 : index
    %c0_9 = arith.constant 0 : index
    %10 = vector.load %arg7[%c0_8, %c0_9] : memref<64x128xf32, #tpu.memory_space<vmem>>, vector<64x128xf32>
    tpu.vector_store %arg7[%c0_8, %c0_9], %9 {strides = array<i32>} : memref<64x128xf32, #tpu.memory_space<vmem>>, vector<64x128xf32>,
    %c0_10 = arith.constant 0 : index
    %c0_11 = arith.constant 0 : index
    %11 = vector.load %arg4[%c0_10, %c0_11] : memref<32x128xbf16, #tpu.memory_space<vmem>>, vector<32x128xbf16>
    %c0_12 = arith.constant 0 : index
    %c0_13 = arith.constant 0 : index
    %12 = vector.load %arg8[%c0_12, %c0_13] : memref<8x32xf32, #tpu.memory_space<vmem>>, vector<8x32xf32>
    %c0_14 = arith.constant 0 : index
    %c0_15 = arith.constant 0 : index
    %13 = vector.load %arg9[%c0_14, %c0_15] : memref<8x32xf32, #tpu.memory_space<vmem>>, vector<8x32xf32>
    %c0_16 = arith.constant 0 : index
    %c0_17 = arith.constant 0 : index
    %14 = vector.load %arg7[%c0_16, %c0_17] : memref<64x128xf32, #tpu.memory_space<vmem>>, vector<8x128xf32>
    %15 = arith.truncf %12 : vector<8x32xf32> to vector<8x32xbf16>
    %cst_18 = arith.constant dense<0.000000e+00> : vector<8x128xf32>
    %16 = tpu.matmul %15, %11, %cst_18 {dimension_numbers = #tpu.dot_dimension_numbers<[1], [0], [0], [1], [0, 0, 1, 1], [], []>} : vector<8x32xbf16>, vector<32x128xbf16>, vector<8x128xf32> -> vector<8x128xf32>
    %17 = arith.addf %14, %16 : vector<8x128xf32>
    %18 = vector.extract_strided_slice %17 {offsets = [0, 0], sizes = [8, 32], strides = [1, 1]} : vector<8x128xf32> to vector<8x32xf32>
    %19 = arith.negf %18 : vector<8x32xf32>
    %20 = math.exp %19 : vector<8x32xf32>
    %cst_19 = arith.constant 1.000000e+00 : f32
    %21 = vector.broadcast %cst_19 : f32 to vector<8x32xf32>
    %22 = arith.addf %21, %20 : vector<8x32xf32>
    %23 = arith.divf %21, %22 : vector<8x32xf32>
    %24 = vector.extract_strided_slice %17 {offsets = [0, 32], sizes = [8, 32], strides = [1, 1]} : vector<8x128xf32> to vector<8x32xf32>
    %25 = arith.negf %24 : vector<8x32xf32>
    %26 = math.exp %25 : vector<8x32xf32>
    %cst_20 = arith.constant 1.000000e+00 : f32
    %27 = vector.broadcast %cst_20 : f32 to vector<8x32xf32>
    %28 = arith.addf %27, %26 : vector<8x32xf32>
    %29 = arith.divf %27, %28 : vector<8x32xf32>
    %30 = vector.extract_strided_slice %17 {offsets = [0, 64], sizes = [8, 32], strides = [1, 1]} : vector<8x128xf32> to vector<8x32xf32>
    %31 = math.tanh %30 : vector<8x32xf32>
    %32 = vector.extract_strided_slice %17 {offsets = [0, 96], sizes = [8, 32], strides = [1, 1]} : vector<8x128xf32> to vector<8x32xf32>
    %33 = arith.negf %32 : vector<8x32xf32>
    %34 = math.exp %33 : vector<8x32xf32>
    %cst_21 = arith.constant 1.000000e+00 : f32
    %35 = vector.broadcast %cst_21 : f32 to vector<8x32xf32>
    %36 = arith.addf %35, %34 : vector<8x32xf32>
    %37 = arith.divf %35, %36 : vector<8x32xf32>
    %38 = arith.mulf %29, %13 : vector<8x32xf32>
    %39 = arith.mulf %23, %31 : vector<8x32xf32>
    %40 = arith.addf %38, %39 : vector<8x32xf32>
    %41 = math.tanh %40 : vector<8x32xf32>
    %42 = arith.mulf %37, %41 : vector<8x32xf32>
    %c0_22 = arith.constant 0 : index
    %c0_23 = arith.constant 0 : index
    %43 = vector.load %arg6[%c0_22, %c0_23] : memref<8x256xf32, #tpu.memory_space<vmem>>, vector<8x32xf32>
    tpu.vector_store %arg6[%c0_22, %c0_23], %42 {strides = array<i32>} : memref<8x256xf32, #tpu.memory_space<vmem>>, vector<8x32xf32>,
    %c8 = arith.constant 8 : index
    %c0_24 = arith.constant 0 : index
    %44 = vector.load %arg7[%c8, %c0_24] : memref<64x128xf32, #tpu.memory_space<vmem>>, vector<8x128xf32>
    %45 = arith.truncf %42 : vector<8x32xf32> to vector<8x32xbf16>
    %cst_25 = arith.constant dense<0.000000e+00> : vector<8x128xf32>
    %46 = tpu.matmul %45, %11, %cst_25 {dimension_numbers = #tpu.dot_dimension_numbers<[1], [0], [0], [1], [0, 0, 1, 1], [], []>} : vector<8x32xbf16>, vector<32x128xbf16>, vector<8x128xf32> -> vector<8x128xf32>
    %47 = arith.addf %44, %46 : vector<8x128xf32>
    %48 = vector.extract_strided_slice %47 {offsets = [0, 0], sizes = [8, 32], strides = [1, 1]} : vector<8x128xf32> to vector<8x32xf32>
    %49 = arith.negf %48 : vector<8x32xf32>
    %50 = math.exp %49 : vector<8x32xf32>
    %cst_26 = arith.constant 1.000000e+00 : f32
    %51 = vector.broadcast %cst_26 : f32 to vector<8x32xf32>
    %52 = arith.addf %51, %50 : vector<8x32xf32>
    %53 = arith.divf %51, %52 : vector<8x32xf32>
    %54 = vector.extract_strided_slice %47 {offsets = [0, 32], sizes = [8, 32], strides = [1, 1]} : vector<8x128xf32> to vector<8x32xf32>
    %55 = arith.negf %54 : vector<8x32xf32>
    %56 = math.exp %55 : vector<8x32xf32>
    %cst_27 = arith.constant 1.000000e+00 : f32
    %57 = vector.broadcast %cst_27 : f32 to vector<8x32xf32>
    %58 = arith.addf %57, %56 : vector<8x32xf32>
    %59 = arith.divf %57, %58 : vector<8x32xf32>
    %60 = vector.extract_strided_slice %47 {offsets = [0, 64], sizes = [8, 32], strides = [1, 1]} : vector<8x128xf32> to vector<8x32xf32>
    %61 = math.tanh %60 : vector<8x32xf32>
    %62 = vector.extract_strided_slice %47 {offsets = [0, 96], sizes = [8, 32], strides = [1, 1]} : vector<8x128xf32> to vector<8x32xf32>
    %63 = arith.negf %62 : vector<8x32xf32>
    %64 = math.exp %63 : vector<8x32xf32>
    %cst_28 = arith.constant 1.000000e+00 : f32
    %65 = vector.broadcast %cst_28 : f32 to vector<8x32xf32>
    %66 = arith.addf %65, %64 : vector<8x32xf32>
    %67 = arith.divf %65, %66 : vector<8x32xf32>
    %68 = arith.mulf %59, %40 : vector<8x32xf32>
    %69 = arith.mulf %53, %61 : vector<8x32xf32>
    %70 = arith.addf %68, %69 : vector<8x32xf32>
    %71 = math.tanh %70 : vector<8x32xf32>
    %72 = arith.mulf %67, %71 : vector<8x32xf32>
    %c0_29 = arith.constant 0 : index
    %c32 = arith.constant 32 : index
    %73 = vector.load %arg6[%c0_29, %c32] : memref<8x256xf32, #tpu.memory_space<vmem>>, vector<8x32xf32>
    tpu.vector_store %arg6[%c0_29, %c32], %72 {strides = array<i32>} : memref<8x256xf32, #tpu.memory_space<vmem>>, vector<8x32xf32>,
    %c16 = arith.constant 16 : index
    %c0_30 = arith.constant 0 : index
    %74 = vector.load %arg7[%c16, %c0_30] : memref<64x128xf32, #tpu.memory_space<vmem>>, vector<8x128xf32>
    %75 = arith.truncf %72 : vector<8x32xf32> to vector<8x32xbf16>
    %cst_31 = arith.constant dense<0.000000e+00> : vector<8x128xf32>
    %76 = tpu.matmul %75, %11, %cst_31 {dimension_numbers = #tpu.dot_dimension_numbers<[1], [0], [0], [1], [0, 0, 1, 1], [], []>} : vector<8x32xbf16>, vector<32x128xbf16>, vector<8x128xf32> -> vector<8x128xf32>
    %77 = arith.addf %74, %76 : vector<8x128xf32>
    %78 = vector.extract_strided_slice %77 {offsets = [0, 0], sizes = [8, 32], strides = [1, 1]} : vector<8x128xf32> to vector<8x32xf32>
    %79 = arith.negf %78 : vector<8x32xf32>
    %80 = math.exp %79 : vector<8x32xf32>
    %cst_32 = arith.constant 1.000000e+00 : f32
    %81 = vector.broadcast %cst_32 : f32 to vector<8x32xf32>
    %82 = arith.addf %81, %80 : vector<8x32xf32>
    %83 = arith.divf %81, %82 : vector<8x32xf32>
    %84 = vector.extract_strided_slice %77 {offsets = [0, 32], sizes = [8, 32], strides = [1, 1]} : vector<8x128xf32> to vector<8x32xf32>
    %85 = arith.negf %84 : vector<8x32xf32>
    %86 = math.exp %85 : vector<8x32xf32>
    %cst_33 = arith.constant 1.000000e+00 : f32
    %87 = vector.broadcast %cst_33 : f32 to vector<8x32xf32>
    %88 = arith.addf %87, %86 : vector<8x32xf32>
    %89 = arith.divf %87, %88 : vector<8x32xf32>
    %90 = vector.extract_strided_slice %77 {offsets = [0, 64], sizes = [8, 32], strides = [1, 1]} : vector<8x128xf32> to vector<8x32xf32>
    %91 = math.tanh %90 : vector<8x32xf32>
    %92 = vector.extract_strided_slice %77 {offsets = [0, 96], sizes = [8, 32], strides = [1, 1]} : vector<8x128xf32> to vector<8x32xf32>
    %93 = arith.negf %92 : vector<8x32xf32>
    %94 = math.exp %93 : vector<8x32xf32>
    %cst_34 = arith.constant 1.000000e+00 : f32
    %95 = vector.broadcast %cst_34 : f32 to vector<8x32xf32>
    %96 = arith.addf %95, %94 : vector<8x32xf32>
    %97 = arith.divf %95, %96 : vector<8x32xf32>
    %98 = arith.mulf %89, %70 : vector<8x32xf32>
    %99 = arith.mulf %83, %91 : vector<8x32xf32>
    %100 = arith.addf %98, %99 : vector<8x32xf32>
    %101 = math.tanh %100 : vector<8x32xf32>
    %102 = arith.mulf %97, %101 : vector<8x32xf32>
    %c0_35 = arith.constant 0 : index
    %c64 = arith.constant 64 : index
    %103 = vector.load %arg6[%c0_35, %c64] : memref<8x256xf32, #tpu.memory_space<vmem>>, vector<8x32xf32>
    tpu.vector_store %arg6[%c0_35, %c64], %102 {strides = array<i32>} : memref<8x256xf32, #tpu.memory_space<vmem>>, vector<8x32xf32>,
    %c24 = arith.constant 24 : index
    %c0_36 = arith.constant 0 : index
    %104 = vector.load %arg7[%c24, %c0_36] : memref<64x128xf32, #tpu.memory_space<vmem>>, vector<8x128xf32>
    %105 = arith.truncf %102 : vector<8x32xf32> to vector<8x32xbf16>
    %cst_37 = arith.constant dense<0.000000e+00> : vector<8x128xf32>
    %106 = tpu.matmul %105, %11, %cst_37 {dimension_numbers = #tpu.dot_dimension_numbers<[1], [0], [0], [1], [0, 0, 1, 1], [], []>} : vector<8x32xbf16>, vector<32x128xbf16>, vector<8x128xf32> -> vector<8x128xf32>
    %107 = arith.addf %104, %106 : vector<8x128xf32>
    %108 = vector.extract_strided_slice %107 {offsets = [0, 0], sizes = [8, 32], strides = [1, 1]} : vector<8x128xf32> to vector<8x32xf32>
    %109 = arith.negf %108 : vector<8x32xf32>
    %110 = math.exp %109 : vector<8x32xf32>
    %cst_38 = arith.constant 1.000000e+00 : f32
    %111 = vector.broadcast %cst_38 : f32 to vector<8x32xf32>
    %112 = arith.addf %111, %110 : vector<8x32xf32>
    %113 = arith.divf %111, %112 : vector<8x32xf32>
    %114 = vector.extract_strided_slice %107 {offsets = [0, 32], sizes = [8, 32], strides = [1, 1]} : vector<8x128xf32> to vector<8x32xf32>
    %115 = arith.negf %114 : vector<8x32xf32>
    %116 = math.exp %115 : vector<8x32xf32>
    %cst_39 = arith.constant 1.000000e+00 : f32
    %117 = vector.broadcast %cst_39 : f32 to vector<8x32xf32>
    %118 = arith.addf %117, %116 : vector<8x32xf32>
    %119 = arith.divf %117, %118 : vector<8x32xf32>
    %120 = vector.extract_strided_slice %107 {offsets = [0, 64], sizes = [8, 32], strides = [1, 1]} : vector<8x128xf32> to vector<8x32xf32>
    %121 = math.tanh %120 : vector<8x32xf32>
    %122 = vector.extract_strided_slice %107 {offsets = [0, 96], sizes = [8, 32], strides = [1, 1]} : vector<8x128xf32> to vector<8x32xf32>
    %123 = arith.negf %122 : vector<8x32xf32>
    %124 = math.exp %123 : vector<8x32xf32>
    %cst_40 = arith.constant 1.000000e+00 : f32
    %125 = vector.broadcast %cst_40 : f32 to vector<8x32xf32>
    %126 = arith.addf %125, %124 : vector<8x32xf32>
    %127 = arith.divf %125, %126 : vector<8x32xf32>
    %128 = arith.mulf %119, %100 : vector<8x32xf32>
    %129 = arith.mulf %113, %121 : vector<8x32xf32>
    %130 = arith.addf %128, %129 : vector<8x32xf32>
    %131 = math.tanh %130 : vector<8x32xf32>
    %132 = arith.mulf %127, %131 : vector<8x32xf32>
    %c0_41 = arith.constant 0 : index
    %c96 = arith.constant 96 : index
    %133 = vector.load %arg6[%c0_41, %c96] : memref<8x256xf32, #tpu.memory_space<vmem>>, vector<8x32xf32>
    tpu.vector_store %arg6[%c0_41, %c96], %132 {strides = array<i32>} : memref<8x256xf32, #tpu.memory_space<vmem>>, vector<8x32xf32>,
    %c32_42 = arith.constant 32 : index
    %c0_43 = arith.constant 0 : index
    %134 = vector.load %arg7[%c32_42, %c0_43] : memref<64x128xf32, #tpu.memory_space<vmem>>, vector<8x128xf32>
    %135 = arith.truncf %132 : vector<8x32xf32> to vector<8x32xbf16>
    %cst_44 = arith.constant dense<0.000000e+00> : vector<8x128xf32>
    %136 = tpu.matmul %135, %11, %cst_44 {dimension_numbers = #tpu.dot_dimension_numbers<[1], [0], [0], [1], [0, 0, 1, 1], [], []>} : vector<8x32xbf16>, vector<32x128xbf16>, vector<8x128xf32> -> vector<8x128xf32>
    %137 = arith.addf %134, %136 : vector<8x128xf32>
    %138 = vector.extract_strided_slice %137 {offsets = [0, 0], sizes = [8, 32], strides = [1, 1]} : vector<8x128xf32> to vector<8x32xf32>
    %139 = arith.negf %138 : vector<8x32xf32>
    %140 = math.exp %139 : vector<8x32xf32>
    %cst_45 = arith.constant 1.000000e+00 : f32
    %141 = vector.broadcast %cst_45 : f32 to vector<8x32xf32>
    %142 = arith.addf %141, %140 : vector<8x32xf32>
    %143 = arith.divf %141, %142 : vector<8x32xf32>
    %144 = vector.extract_strided_slice %137 {offsets = [0, 32], sizes = [8, 32], strides = [1, 1]} : vector<8x128xf32> to vector<8x32xf32>
    %145 = arith.negf %144 : vector<8x32xf32>
    %146 = math.exp %145 : vector<8x32xf32>
    %cst_46 = arith.constant 1.000000e+00 : f32
    %147 = vector.broadcast %cst_46 : f32 to vector<8x32xf32>
    %148 = arith.addf %147, %146 : vector<8x32xf32>
    %149 = arith.divf %147, %148 : vector<8x32xf32>
    %150 = vector.extract_strided_slice %137 {offsets = [0, 64], sizes = [8, 32], strides = [1, 1]} : vector<8x128xf32> to vector<8x32xf32>
    %151 = math.tanh %150 : vector<8x32xf32>
    %152 = vector.extract_strided_slice %137 {offsets = [0, 96], sizes = [8, 32], strides = [1, 1]} : vector<8x128xf32> to vector<8x32xf32>
    %153 = arith.negf %152 : vector<8x32xf32>
    %154 = math.exp %153 : vector<8x32xf32>
    %cst_47 = arith.constant 1.000000e+00 : f32
    %155 = vector.broadcast %cst_47 : f32 to vector<8x32xf32>
    %156 = arith.addf %155, %154 : vector<8x32xf32>
    %157 = arith.divf %155, %156 : vector<8x32xf32>
    %158 = arith.mulf %149, %130 : vector<8x32xf32>
    %159 = arith.mulf %143, %151 : vector<8x32xf32>
    %160 = arith.addf %158, %159 : vector<8x32xf32>
    %161 = math.tanh %160 : vector<8x32xf32>
    %162 = arith.mulf %157, %161 : vector<8x32xf32>
    %c0_48 = arith.constant 0 : index
    %c128 = arith.constant 128 : index
    %163 = vector.load %arg6[%c0_48, %c128] : memref<8x256xf32, #tpu.memory_space<vmem>>, vector<8x32xf32>
    tpu.vector_store %arg6[%c0_48, %c128], %162 {strides = array<i32>} : memref<8x256xf32, #tpu.memory_space<vmem>>, vector<8x32xf32>,
    %c40 = arith.constant 40 : index
    %c0_49 = arith.constant 0 : index
    %164 = vector.load %arg7[%c40, %c0_49] : memref<64x128xf32, #tpu.memory_space<vmem>>, vector<8x128xf32>
    %165 = arith.truncf %162 : vector<8x32xf32> to vector<8x32xbf16>
    %cst_50 = arith.constant dense<0.000000e+00> : vector<8x128xf32>
    %166 = tpu.matmul %165, %11, %cst_50 {dimension_numbers = #tpu.dot_dimension_numbers<[1], [0], [0], [1], [0, 0, 1, 1], [], []>} : vector<8x32xbf16>, vector<32x128xbf16>, vector<8x128xf32> -> vector<8x128xf32>
    %167 = arith.addf %164, %166 : vector<8x128xf32>
    %168 = vector.extract_strided_slice %167 {offsets = [0, 0], sizes = [8, 32], strides = [1, 1]} : vector<8x128xf32> to vector<8x32xf32>
    %169 = arith.negf %168 : vector<8x32xf32>
    %170 = math.exp %169 : vector<8x32xf32>
    %cst_51 = arith.constant 1.000000e+00 : f32
    %171 = vector.broadcast %cst_51 : f32 to vector<8x32xf32>
    %172 = arith.addf %171, %170 : vector<8x32xf32>
    %173 = arith.divf %171, %172 : vector<8x32xf32>
    %174 = vector.extract_strided_slice %167 {offsets = [0, 32], sizes = [8, 32], strides = [1, 1]} : vector<8x128xf32> to vector<8x32xf32>
    %175 = arith.negf %174 : vector<8x32xf32>
    %176 = math.exp %175 : vector<8x32xf32>
    %cst_52 = arith.constant 1.000000e+00 : f32
    %177 = vector.broadcast %cst_52 : f32 to vector<8x32xf32>
    %178 = arith.addf %177, %176 : vector<8x32xf32>
    %179 = arith.divf %177, %178 : vector<8x32xf32>
    %180 = vector.extract_strided_slice %167 {offsets = [0, 64], sizes = [8, 32], strides = [1, 1]} : vector<8x128xf32> to vector<8x32xf32>
    %181 = math.tanh %180 : vector<8x32xf32>
    %182 = vector.extract_strided_slice %167 {offsets = [0, 96], sizes = [8, 32], strides = [1, 1]} : vector<8x128xf32> to vector<8x32xf32>
    %183 = arith.negf %182 : vector<8x32xf32>
    %184 = math.exp %183 : vector<8x32xf32>
    %cst_53 = arith.constant 1.000000e+00 : f32
    %185 = vector.broadcast %cst_53 : f32 to vector<8x32xf32>
    %186 = arith.addf %185, %184 : vector<8x32xf32>
    %187 = arith.divf %185, %186 : vector<8x32xf32>
    %188 = arith.mulf %179, %160 : vector<8x32xf32>
    %189 = arith.mulf %173, %181 : vector<8x32xf32>
    %190 = arith.addf %188, %189 : vector<8x32xf32>
    %191 = math.tanh %190 : vector<8x32xf32>
    %192 = arith.mulf %187, %191 : vector<8x32xf32>
    %c0_54 = arith.constant 0 : index
    %c160 = arith.constant 160 : index
    %193 = vector.load %arg6[%c0_54, %c160] : memref<8x256xf32, #tpu.memory_space<vmem>>, vector<8x32xf32>
    tpu.vector_store %arg6[%c0_54, %c160], %192 {strides = array<i32>} : memref<8x256xf32, #tpu.memory_space<vmem>>, vector<8x32xf32>,
    %c48 = arith.constant 48 : index
    %c0_55 = arith.constant 0 : index
    %194 = vector.load %arg7[%c48, %c0_55] : memref<64x128xf32, #tpu.memory_space<vmem>>, vector<8x128xf32>
    %195 = arith.truncf %192 : vector<8x32xf32> to vector<8x32xbf16>
    %cst_56 = arith.constant dense<0.000000e+00> : vector<8x128xf32>
    %196 = tpu.matmul %195, %11, %cst_56 {dimension_numbers = #tpu.dot_dimension_numbers<[1], [0], [0], [1], [0, 0, 1, 1], [], []>} : vector<8x32xbf16>, vector<32x128xbf16>, vector<8x128xf32> -> vector<8x128xf32>
    %197 = arith.addf %194, %196 : vector<8x128xf32>
    %198 = vector.extract_strided_slice %197 {offsets = [0, 0], sizes = [8, 32], strides = [1, 1]} : vector<8x128xf32> to vector<8x32xf32>
    %199 = arith.negf %198 : vector<8x32xf32>
    %200 = math.exp %199 : vector<8x32xf32>
    %cst_57 = arith.constant 1.000000e+00 : f32
    %201 = vector.broadcast %cst_57 : f32 to vector<8x32xf32>
    %202 = arith.addf %201, %200 : vector<8x32xf32>
    %203 = arith.divf %201, %202 : vector<8x32xf32>
    %204 = vector.extract_strided_slice %197 {offsets = [0, 32], sizes = [8, 32], strides = [1, 1]} : vector<8x128xf32> to vector<8x32xf32>
    %205 = arith.negf %204 : vector<8x32xf32>
    %206 = math.exp %205 : vector<8x32xf32>
    %cst_58 = arith.constant 1.000000e+00 : f32
    %207 = vector.broadcast %cst_58 : f32 to vector<8x32xf32>
    %208 = arith.addf %207, %206 : vector<8x32xf32>
    %209 = arith.divf %207, %208 : vector<8x32xf32>
    %210 = vector.extract_strided_slice %197 {offsets = [0, 64], sizes = [8, 32], strides = [1, 1]} : vector<8x128xf32> to vector<8x32xf32>
    %211 = math.tanh %210 : vector<8x32xf32>
    %212 = vector.extract_strided_slice %197 {offsets = [0, 96], sizes = [8, 32], strides = [1, 1]} : vector<8x128xf32> to vector<8x32xf32>
    %213 = arith.negf %212 : vector<8x32xf32>
    %214 = math.exp %213 : vector<8x32xf32>
    %cst_59 = arith.constant 1.000000e+00 : f32
    %215 = vector.broadcast %cst_59 : f32 to vector<8x32xf32>
    %216 = arith.addf %215, %214 : vector<8x32xf32>
    %217 = arith.divf %215, %216 : vector<8x32xf32>
    %218 = arith.mulf %209, %190 : vector<8x32xf32>
    %219 = arith.mulf %203, %211 : vector<8x32xf32>
    %220 = arith.addf %218, %219 : vector<8x32xf32>
    %221 = math.tanh %220 : vector<8x32xf32>
    %222 = arith.mulf %217, %221 : vector<8x32xf32>
    %c0_60 = arith.constant 0 : index
    %c192 = arith.constant 192 : index
    %223 = vector.load %arg6[%c0_60, %c192] : memref<8x256xf32, #tpu.memory_space<vmem>>, vector<8x32xf32>
    tpu.vector_store %arg6[%c0_60, %c192], %222 {strides = array<i32>} : memref<8x256xf32, #tpu.memory_space<vmem>>, vector<8x32xf32>,
    %c56 = arith.constant 56 : index
    %c0_61 = arith.constant 0 : index
    %224 = vector.load %arg7[%c56, %c0_61] : memref<64x128xf32, #tpu.memory_space<vmem>>, vector<8x128xf32>
    %225 = arith.truncf %222 : vector<8x32xf32> to vector<8x32xbf16>
    %cst_62 = arith.constant dense<0.000000e+00> : vector<8x128xf32>
    %226 = tpu.matmul %225, %11, %cst_62 {dimension_numbers = #tpu.dot_dimension_numbers<[1], [0], [0], [1], [0, 0, 1, 1], [], []>} : vector<8x32xbf16>, vector<32x128xbf16>, vector<8x128xf32> -> vector<8x128xf32>
    %227 = arith.addf %224, %226 : vector<8x128xf32>
    %228 = vector.extract_strided_slice %227 {offsets = [0, 0], sizes = [8, 32], strides = [1, 1]} : vector<8x128xf32> to vector<8x32xf32>
    %229 = arith.negf %228 : vector<8x32xf32>
    %230 = math.exp %229 : vector<8x32xf32>
    %cst_63 = arith.constant 1.000000e+00 : f32
    %231 = vector.broadcast %cst_63 : f32 to vector<8x32xf32>
    %232 = arith.addf %231, %230 : vector<8x32xf32>
    %233 = arith.divf %231, %232 : vector<8x32xf32>
    %234 = vector.extract_strided_slice %227 {offsets = [0, 32], sizes = [8, 32], strides = [1, 1]} : vector<8x128xf32> to vector<8x32xf32>
    %235 = arith.negf %234 : vector<8x32xf32>
    %236 = math.exp %235 : vector<8x32xf32>
    %cst_64 = arith.constant 1.000000e+00 : f32
    %237 = vector.broadcast %cst_64 : f32 to vector<8x32xf32>
    %238 = arith.addf %237, %236 : vector<8x32xf32>
    %239 = arith.divf %237, %238 : vector<8x32xf32>
    %240 = vector.extract_strided_slice %227 {offsets = [0, 64], sizes = [8, 32], strides = [1, 1]} : vector<8x128xf32> to vector<8x32xf32>
    %241 = math.tanh %240 : vector<8x32xf32>
    %242 = vector.extract_strided_slice %227 {offsets = [0, 96], sizes = [8, 32], strides = [1, 1]} : vector<8x128xf32> to vector<8x32xf32>
    %243 = arith.negf %242 : vector<8x32xf32>
    %244 = math.exp %243 : vector<8x32xf32>
    %cst_65 = arith.constant 1.000000e+00 : f32
    %245 = vector.broadcast %cst_65 : f32 to vector<8x32xf32>
    %246 = arith.addf %245, %244 : vector<8x32xf32>
    %247 = arith.divf %245, %246 : vector<8x32xf32>
    %248 = arith.mulf %239, %220 : vector<8x32xf32>
    %249 = arith.mulf %233, %241 : vector<8x32xf32>
    %250 = arith.addf %248, %249 : vector<8x32xf32>
    %251 = math.tanh %250 : vector<8x32xf32>
    %252 = arith.mulf %247, %251 : vector<8x32xf32>
    %c0_66 = arith.constant 0 : index
    %c224 = arith.constant 224 : index
    %253 = vector.load %arg6[%c0_66, %c224] : memref<8x256xf32, #tpu.memory_space<vmem>>, vector<8x32xf32>
    tpu.vector_store %arg6[%c0_66, %c224], %252 {strides = array<i32>} : memref<8x256xf32, #tpu.memory_space<vmem>>, vector<8x32xf32>,
    %c0_67 = arith.constant 0 : index
    %c0_68 = arith.constant 0 : index
    %254 = vector.load %arg8[%c0_67, %c0_68] : memref<8x32xf32, #tpu.memory_space<vmem>>, vector<8x32xf32>
    tpu.vector_store %arg8[%c0_67, %c0_68], %252 {strides = array<i32>} : memref<8x32xf32, #tpu.memory_space<vmem>>, vector<8x32xf32>,
    %c0_69 = arith.constant 0 : index
    %c0_70 = arith.constant 0 : index
    %255 = vector.load %arg9[%c0_69, %c0_70] : memref<8x32xf32, #tpu.memory_space<vmem>>, vector<8x32xf32>
    tpu.vector_store %arg9[%c0_69, %c0_70], %250 {strides = array<i32>} : memref<8x32xf32, #tpu.memory_space<vmem>>, vector<8x32xf32>,
    return
  }
  func.func @transform_0(%arg0: i32, %arg1: i32) -> (i32, i32, i32, i32) {
    %c0_i32 = arith.constant 0 : i32
    %c0_i32_0 = arith.constant 0 : i32
    %c0_i32_1 = arith.constant 0 : i32
    return %arg1, %arg0, %c0_i32, %c0_i32_0 : i32, i32, i32, i32
  }
  func.func @transform_1(%arg0: i32, %arg1: i32) -> (i32, i32) {
    %c0_i32 = arith.constant 0 : i32
    %c0_i32_0 = arith.constant 0 : i32
    %c0_i32_1 = arith.constant 0 : i32
    return %c0_i32, %c0_i32_0 : i32, i32
  }
  func.func @transform_2(%arg0: i32, %arg1: i32) -> (i32, i32) {
    %c0_i32 = arith.constant 0 : i32
    %c0_i32_0 = arith.constant 0 : i32
    %c0_i32_1 = arith.constant 0 : i32
    return %c0_i32, %c0_i32_0 : i32, i32
  }
  func.func @transform_3(%arg0: i32, %arg1: i32) -> (i32, i32) {
    %c0_i32 = arith.constant 0 : i32
    %c0_i32_0 = arith.constant 0 : i32
    %c0_i32_1 = arith.constant 0 : i32
    return %c0_i32, %c0_i32_0 : i32, i32
  }
  func.func @transform_4(%arg0: i32, %arg1: i32) -> (i32, i32) {
    %c0_i32 = arith.constant 0 : i32
    return %arg0, %arg1 : i32, i32
  }
}

</mosaic_0001>

<llo_original>
// kernel: tpu_custom_call.1
$region0: #{tpu_custom_call.1}
  #allocation0 [shape = 'u32[]', space=smem, size = 0x4, offset = 0x4, fixed_abs, tag = 'smem constant byte address 0x4 - core index']
  #allocation1 [shape = 'u32[144,128]{1,0:T(1,128)}', space=vmem, size = 0x12000, scoped, tag = 'internal scratch']
  #allocation2 [shape = 'f32[64,128]{1,0:T(8,128)}', space=vmem, size = 0x8000, scoped, tag = 'scratch operand']
  #allocation3 [shape = 'f32[8,32]{1,0:T(8,128)}', space=vmem, size = 0x1000, scoped, tag = 'scratch operand']
  #allocation4 [shape = 'f32[8,32]{1,0:T(8,128)}', space=vmem, size = 0x1000, scoped, tag = 'scratch operand']
  %s0 = inlined_call_operand.vmem [shape: f32[1,1,64,16], index: 0, kind: input, shape index: {}]
  %s1 = inlined_call_operand.vmem [shape: f32[16,128], index: 1, kind: input, shape index: {}]
  %s2 = inlined_call_operand.vmem [shape: bf16[32,128], index: 2, kind: input, shape index: {}]
  %s3 = inlined_call_operand.vmem [shape: f32[1,128], index: 3, kind: input, shape index: {}]
  %s4 = inlined_call_operand.hbm [shape: f32[8,256], index: 4, kind: output, shape index: {}]
  %s5 = sld [smem:[#allocation0]]
  $region30: #{tpu_custom_call.1} parent=0
    _
  %s7 = ssub.s32 1, %s5
  %s8 = scalar_select 0, %s7, %s5
  $region1: #{tpu_custom_call.1} parent=0
    #allocation5 [shape = 'u8[8192]{0}', space=vmem, size = 0x2000, scoped, tag = 'output window, operand 0, single buffered']
    #allocation6 [shape = 's32[1]{0}', space=sflag, size = 0x4, scoped, tag = 'scoped memory for tpu_custom_call.1']
    %9 = vsyncpa [#allocation6], 0
    // Predicated region
    $region2: #{tpu_custom_call.1} parent=1 // pred_check
      _
    $region3: #{tpu_custom_call.1} parent=1 // pred_check_branch
      %11 = sbr.rel (0) target = $region5
    $region4: #{tpu_custom_call.1} parent=1 // pred_region
      _
    $region5: #{tpu_custom_call.1} parent=1 // pred_fallthru
      _
    // Predicated region
    $region6: #{tpu_custom_call.1} parent=1 // pred_check
      _
    $region7: #{tpu_custom_call.1} parent=1 // pred_check_branch
      %13 = sbr.rel (0) target = $region9
    $region8: #{tpu_custom_call.1} parent=1 // pred_region
      _
    $region9: #{tpu_custom_call.1} parent=1 // pred_fallthru
      _
    // Predicated region
    $region10: #{tpu_custom_call.1} parent=1 // pred_check
      _
    $region11: #{tpu_custom_call.1} parent=1 // pred_check_branch
      %15 = sbr.rel (0) target = $region13
    $region12: #{tpu_custom_call.1} parent=1 // pred_region
      _
    $region13: #{tpu_custom_call.1} parent=1 // pred_fallthru
      _
    // Predicated region
    $region14: #{tpu_custom_call.1} parent=1 // pred_check
      _
    $region15: #{tpu_custom_call.1} parent=1 // pred_check_branch
      %17 = sbr.rel (0) target = $region17
    $region16: #{tpu_custom_call.1} parent=1 // pred_region
      _
    $region17: #{tpu_custom_call.1} parent=1 // pred_fallthru
      _
    %p19 = scmp.eq.s32.totalorder 0, 0
    // Predicated region
    $region18: #{tpu_custom_call.1} parent=1 // pred_check
      %p20 = pneg %p19
    $region19: #{tpu_custom_call.1} parent=1 // pred_check_branch
      %22 = sbr.rel (%p20) target = $region21
    $region20: #{tpu_custom_call.1} parent=1 // pred_region
      %vm23 = vcmask 261120
      %24 = vst.msk [vmem:[#allocation3] sm:$0xff] %vm23, 0.0
      %25 = vst.msk [vmem:[#allocation4] sm:$0xff] %vm23, 0.0
    $region21: #{tpu_custom_call.1} parent=1 // pred_fallthru
      _
    %v26 = vld [vmem:[%s0] sm:$0xff]
    %v27 = vld [vmem:[%s0 + $0x8] sm:$0xff]
    %v28 = vld [vmem:[%s0 + $0x10] sm:$0xff]
    %v29 = vld [vmem:[%s0 + $0x18] sm:$0xff]
    %v30 = vld [vmem:[%s0 + $0x20] sm:$0xff]
    %v31 = vld [vmem:[%s0 + $0x28] sm:$0xff]
    %v32 = vld [vmem:[%s0 + $0x30] sm:$0xff]
    %v33 = vld [vmem:[%s0 + $0x38] sm:$0xff]
    %v34 = vld [vmem:[%s1] sm:$0xff]
    %v35 = vld [vmem:[%s1 + $0x8] sm:$0xff]
    %v36 = vld [vmem:[%s3] sm:$0x1]
    %v38 = vlaneseq
    %v39 = vshrl.u32 %v38, 7
    %v40 = vsub.s32 0, %v39
    %v41 = vrot.slane %v36, %v40
    %vm43 = vcmask 130048
    %v45 = vsel %vm43, %v26, 0
    %v48 = vsel %vm43, %v27, 0
    %v51 = vsel %vm43, %v28, 0
    %v54 = vsel %vm43, %v29, 0
    %v57 = vsel %vm43, %v30, 0
    %v60 = vsel %vm43, %v31, 0
    %v63 = vsel %vm43, %v32, 0
    %v66 = vsel %vm43, %v33, 0
    %68 = vmatprep.subr.mxu0 0.0
    %69 = vmatpush1.msra.mxu0 0.0
    %70 = vmatprep.subr.mxu0 0.0
    %71 = vmatpush1.msra.mxu0 0.0
    %72 = vmatprep.subr.mxu0 0.0
    %73 = vmatpush1.msra.mxu0 0.0
    %74 = vmatprep.subr.mxu0 0.0
    %75 = vmatpush1.msra.mxu0 0.0
    %76 = vmatprep.subr.mxu0 0.0
    %77 = vmatpush1.msra.mxu0 0.0
    %78 = vmatprep.subr.mxu0 0.0
    %79 = vmatpush1.msra.mxu0 0.0
    %80 = vmatprep.subr.mxu0 0.0
    %81 = vmatpush1.msra.mxu0 0.0
    %82 = vmatprep.subr.mxu0 0.0
    %83 = vmatpush1.msra.mxu0 0.0
    %84 = vmatprep.subr.mxu0 0.0
    %85 = vmatpush1.msra.mxu0 0.0
    %86 = vmatprep.subr.mxu0 0.0
    %87 = vmatpush1.msra.mxu0 0.0
    %88 = vmatprep.subr.mxu0 0.0
    %89 = vmatpush1.msra.mxu0 0.0
    %90 = vmatprep.subr.mxu0 0.0
    %91 = vmatpush1.msra.mxu0 0.0
    %92 = vmatprep.subr.mxu0 0.0
    %93 = vmatpush1.msra.mxu0 0.0
    %94 = vmatprep.subr.mxu0 0.0
    %95 = vmatpush1.msra.mxu0 0.0
    %96 = vmatprep.subr.mxu0 0.0
    %97 = vmatpush1.msra.mxu0 %v35
    %98 = vmatprep.subr.mxu0 0.0
    %99 = vmatpush1.msra.mxu0 %v34
    %100 = vmatprep.subr.mxu0 0.0
    %101 = vmatpush2.msra.mxu0 0.0
    %102 = vmatprep.subr.mxu0 0.0
    %103 = vmatpush2.msra.mxu0 0.0
    %104 = vmatprep.subr.mxu0 0.0
    %105 = vmatpush2.msra.mxu0 0.0
    %106 = vmatprep.subr.mxu0 0.0
    %107 = vmatpush2.msra.mxu0 0.0
    %108 = vmatprep.subr.mxu0 0.0
    %109 = vmatpush2.msra.mxu0 0.0
    %110 = vmatprep.subr.mxu0 0.0
    %111 = vmatpush2.msra.mxu0 0.0
    %112 = vmatprep.subr.mxu0 0.0
    %113 = vmatpush2.msra.mxu0 0.0
    %114 = vmatprep.subr.mxu0 0.0
    %115 = vmatpush2.msra.mxu0 0.0
    %116 = vmatprep.subr.mxu0 0.0
    %117 = vmatpush2.msra.mxu0 0.0
    %118 = vmatprep.subr.mxu0 0.0
    %119 = vmatpush2.msra.mxu0 0.0
    %120 = vmatprep.subr.mxu0 0.0
    %121 = vmatpush2.msra.mxu0 0.0
    %122 = vmatprep.subr.mxu0 0.0
    %123 = vmatpush2.msra.mxu0 0.0
    %124 = vmatprep.subr.mxu0 0.0
    %125 = vmatpush2.msra.mxu0 0.0
    %126 = vmatprep.subr.mxu0 0.0
    %127 = vmatpush2.msra.mxu0 0.0
    %128 = vmatprep.subr.mxu0 0.0
    %129 = vmatpush2.msra.mxu0 0.0
    %130 = vmatprep.subr.mxu0 0.0
    %131 = vmatpush2.msra.mxu0 0.0
    %132 = vmatprep.mubr.f32.mxu0 0.0
    %133 = vmatmul.mubr.f32.gmra.mxu0 %v45
    %v134 = vpop.f32.mrf.mxu0
    %v135 = vadd.f32 %v41, %v134
    %v136 = vpop.f32.mrf.mxu0
    %137 = vmatprep.mubr.f32.mxu0 0.0
    %138 = vmatmul.mubr.f32.gmra.mxu0 %v48
    %v139 = vpop.f32.mrf.mxu0
    %v140 = vadd.f32 %v41, %v139
    %v141 = vpop.f32.mrf.mxu0
    %142 = vmatprep.mubr.f32.mxu0 0.0
    %143 = vmatmul.mubr.f32.gmra.mxu0 %v51
    %v144 = vpop.f32.mrf.mxu0
    %v145 = vadd.f32 %v41, %v144
    %v146 = vpop.f32.mrf.mxu0
    %147 = vmatprep.mubr.f32.mxu0 0.0
    %148 = vmatmul.mubr.f32.gmra.mxu0 %v54
    %v149 = vpop.f32.mrf.mxu0
    %v150 = vadd.f32 %v41, %v149
    %v151 = vpop.f32.mrf.mxu0
    %152 = vmatprep.mubr.f32.mxu0 0.0
    %153 = vmatmul.mubr.f32.gmra.mxu0 %v57
    %v154 = vpop.f32.mrf.mxu0
    %v155 = vadd.f32 %v41, %v154
    %v156 = vpop.f32.mrf.mxu0
    %157 = vmatprep.mubr.f32.mxu0 0.0
    %158 = vmatmul.mubr.f32.gmra.mxu0 %v60
    %v159 = vpop.f32.mrf.mxu0
    %v160 = vadd.f32 %v41, %v159
    %v161 = vpop.f32.mrf.mxu0
    %162 = vmatprep.mubr.f32.mxu0 0.0
    %163 = vmatmul.mubr.f32.gmra.mxu0 %v63
    %v164 = vpop.f32.mrf.mxu0
    %v165 = vadd.f32 %v41, %v164
    %v166 = vpop.f32.mrf.mxu0
    %167 = vmatprep.mubr.f32.mxu0 0.0
    %168 = vmatmul.mubr.f32.gmra.mxu0 %v66
    %v169 = vpop.f32.mrf.mxu0
    %v170 = vadd.f32 %v41, %v169
    %v171 = vpop.f32.mrf.mxu0
    %172 = vdwg.mxu0
    %173 = vst [vmem:[#allocation2] sm:$0xff] %v135
    %174 = vst [vmem:[#allocation2 + $0x8] sm:$0xff] %v140
    %175 = vst [vmem:[#allocation2 + $0x10] sm:$0xff] %v145
    %176 = vst [vmem:[#allocation2 + $0x18] sm:$0xff] %v150
    %177 = vst [vmem:[#allocation2 + $0x20] sm:$0xff] %v155
    %178 = vst [vmem:[#allocation2 + $0x28] sm:$0xff] %v160
    %179 = vst [vmem:[#allocation2 + $0x30] sm:$0xff] %v165
    %180 = vst [vmem:[#allocation2 + $0x38] sm:$0xff] %v170
    %v181 = vld [vmem:[%s2] sm:$0xf]
    %v182 = vld [vmem:[%s2 + $0x4] sm:$0xf]
    %v183 = vld [vmem:[%s2 + $0x8] sm:$0xf]
    %v184 = vld [vmem:[%s2 + $0xc] sm:$0xf]
    %v185 = vld [vmem:[#allocation3] sm:$0xff]
    %v186 = vld [vmem:[#allocation4] sm:$0xff]
    %v187 = vld [vmem:[#allocation2] sm:$0xff]
    %v188 = vpack.c.bf16 %v185, %v185
    %v193 = vunpack.c.l.b16 %v181
    %v194 = vunpack.c.l.b16 %v182
    %v195 = vunpack.c.l.b16 %v183
    %v196 = vunpack.c.l.b16 %v184
    %v197 = vpack.c.b16 %v194, %v193
    %v198 = vpack.c.b16 %v196, %v195
    %vm201 = vcmask 261120
    %v203 = vsel %vm201, %v188, 0
    %205 = vmatprep.subr.bf16.mxu0 0
    %206 = vmatpush1.bf16.msra.mxu0 0
    %207 = vmatprep.subr.bf16.mxu0 0
    %208 = vmatpush1.bf16.msra.mxu0 0
    %209 = vmatprep.subr.bf16.mxu0 0
    %210 = vmatpush1.bf16.msra.mxu0 0
    %211 = vmatprep.subr.bf16.mxu0 0
    %212 = vmatpush1.bf16.msra.mxu0 0
    %213 = vmatprep.subr.bf16.mxu0 0
    %214 = vmatpush1.bf16.msra.mxu0 0
    %215 = vmatprep.subr.bf16.mxu0 0
    %216 = vmatpush1.bf16.msra.mxu0 0
    %217 = vmatprep.subr.bf16.mxu0 0
    %218 = vmatpush1.bf16.msra.mxu0 %v198
    %219 = vmatprep.subr.bf16.mxu0 0
    %220 = vmatpush1.bf16.msra.mxu0 %v197
    %221 = vmatprep.subr.bf16.mxu0 0
    %222 = vmatpush2.bf16.msra.mxu0 0
    %223 = vmatprep.subr.bf16.mxu0 0
    %224 = vmatpush2.bf16.msra.mxu0 0
    %225 = vmatprep.subr.bf16.mxu0 0
    %226 = vmatpush2.bf16.msra.mxu0 0
    %227 = vmatprep.subr.bf16.mxu0 0
    %228 = vmatpush2.bf16.msra.mxu0 0
    %229 = vmatprep.subr.bf16.mxu0 0
    %230 = vmatpush2.bf16.msra.mxu0 0
    %231 = vmatprep.subr.bf16.mxu0 0
    %232 = vmatpush2.bf16.msra.mxu0 0
    %233 = vmatprep.subr.bf16.mxu0 0
    %234 = vmatpush2.bf16.msra.mxu0 0
    %235 = vmatprep.subr.bf16.mxu0 0
    %236 = vmatpush2.bf16.msra.mxu0 0
    %237 = vmatprep.mubr.bf16.mxu0 0
    %238 = vmatmul.mubr.bf16.gmra.mxu0 %v203
    %v239 = vpop.f32.mrf.mxu0
    %v240 = vadd.f32 0.0, %v239
    %v241 = vpop.f32.mrf.mxu0
    %v242 = vpop.f32.mrf.mxu0
    %v243 = vpop.f32.mrf.mxu0
    %244 = vdwg.mxu0
    %v245 = vadd.f32 %v187, %v240
    %v246 = vxor.u32 %v245, 2147483648
    %v247 = vmul.f32 %v246, 1.442695
    %v248 = vpow.pop %v247
    %v249 = vadd.f32 %v248, 1.0
    %v250 = vrcp.pop %v249
    %v251 = vmul.f32 1.0, %v250
    %v252 = vtanh.pop %v245
    %254 = vrot.lane.b32.xlu0 %v186, 32
    %v255 = vpop.permute.xlu0 %254
    %v257 = vmul.f32 %v251, %v255
    %259 = vrot.lane.b32.xlu0 %v252, 64
    %v260 = vpop.permute.xlu0 %259
    %v262 = vmul.f32 %v251, %v260
    %264 = vrot.lane.b32.xlu0 %v262, 32
    %v265 = vpop.permute.xlu0 %264
    %v267 = vadd.f32 %v257, %v265
    %v268 = vtanh.pop %v267
    %270 = vrot.lane.b32.xlu0 %v268, 64
    %v271 = vpop.permute.xlu0 %270
    %v273 = vmul.f32 %v251, %v271
    %275 = vrot.lane.b32.xlu0 %v273, 32
    %v276 = vpop.permute.xlu0 %275
    %278 = vst.msk [vmem:[#allocation5] sm:$0xff] %vm201, %v276
    %v279 = vld [vmem:[#allocation2 + $0x8] sm:$0xff]
    %v280 = vpack.c.bf16 %v273, %v273
    %282 = vrot.lane.b32.xlu0 %v280, 32
    %v283 = vpop.permute.xlu0 %282
    %v285 = vsel %vm201, %v283, 0
    %287 = vmatprep.subr.bf16.mxu0 0
    %288 = vmatpush1.bf16.msra.mxu0 0
    %289 = vmatprep.subr.bf16.mxu0 0
    %290 = vmatpush1.bf16.msra.mxu0 0
    %291 = vmatprep.subr.bf16.mxu0 0
    %292 = vmatpush1.bf16.msra.mxu0 0
    %293 = vmatprep.subr.bf16.mxu0 0
    %294 = vmatpush1.bf16.msra.mxu0 0
    %295 = vmatprep.subr.bf16.mxu0 0
    %296 = vmatpush1.bf16.msra.mxu0 0
    %297 = vmatprep.subr.bf16.mxu0 0
    %298 = vmatpush1.bf16.msra.mxu0 0
    %299 = vmatprep.subr.bf16.mxu0 0
    %300 = vmatpush1.bf16.msra.mxu0 %v198
    %301 = vmatprep.subr.bf16.mxu0 0
    %302 = vmatpush1.bf16.msra.mxu0 %v197
    %303 = vmatprep.subr.bf16.mxu0 0
    %304 = vmatpush2.bf16.msra.mxu0 0
    %305 = vmatprep.subr.bf16.mxu0 0
    %306 = vmatpush2.bf16.msra.mxu0 0
    %307 = vmatprep.subr.bf16.mxu0 0
    %308 = vmatpush2.bf16.msra.mxu0 0
    %309 = vmatprep.subr.bf16.mxu0 0
    %310 = vmatpush2.bf16.msra.mxu0 0
    %311 = vmatprep.subr.bf16.mxu0 0
    %312 = vmatpush2.bf16.msra.mxu0 0
    %313 = vmatprep.subr.bf16.mxu0 0
    %314 = vmatpush2.bf16.msra.mxu0 0
    %315 = vmatprep.subr.bf16.mxu0 0
    %316 = vmatpush2.bf16.msra.mxu0 0
    %317 = vmatprep.subr.bf16.mxu0 0
    %318 = vmatpush2.bf16.msra.mxu0 0
    %319 = vmatprep.mubr.bf16.mxu0 0
    %320 = vmatmul.mubr.bf16.gmra.mxu0 %v285
    %v321 = vpop.f32.mrf.mxu0
    %v322 = vadd.f32 0.0, %v321
    %v323 = vpop.f32.mrf.mxu0
    %v324 = vpop.f32.mrf.mxu0
    %v325 = vpop.f32.mrf.mxu0
    %326 = vdwg.mxu0
    %v327 = vadd.f32 %v279, %v322
    %v328 = vxor.u32 %v327, 2147483648
    %v329 = vmul.f32 %v328, 1.442695
    %v330 = vpow.pop %v329
    %v331 = vadd.f32 %v330, 1.0
    %v332 = vrcp.pop %v331
    %v333 = vmul.f32 1.0, %v332
    %v334 = vtanh.pop %v327
    %v335 = vmul.f32 %v333, %v267
    %337 = vrot.lane.b32.xlu0 %v334, 64
    %v338 = vpop.permute.xlu0 %337
    %v340 = vmul.f32 %v333, %v338
    %342 = vrot.lane.b32.xlu0 %v340, 32
    %v343 = vpop.permute.xlu0 %342
    %v345 = vadd.f32 %v335, %v343
    %v346 = vtanh.pop %v345
    %348 = vrot.lane.b32.xlu0 %v346, 64
    %v349 = vpop.permute.xlu0 %348
    %v351 = vmul.f32 %v333, %v349
    %353 = vrot.lane.b32.xlu0 %v351, 64
    %v354 = vpop.permute.xlu0 %353
    %vm356 = vcmask 523520
    %357 = vst.msk [vmem:[#allocation5] sm:$0xff] %vm356, %v354
    %v358 = vld [vmem:[#allocation2 + $0x10] sm:$0xff]
    %v359 = vpack.c.bf16 %v351, %v351
    %361 = vrot.lane.b32.xlu0 %v359, 32
    %v362 = vpop.permute.xlu0 %361
    %v364 = vsel %vm201, %v362, 0
    %366 = vmatprep.subr.bf16.mxu0 0
    %367 = vmatpush1.bf16.msra.mxu0 0
    %368 = vmatprep.subr.bf16.mxu0 0
    %369 = vmatpush1.bf16.msra.mxu0 0
    %370 = vmatprep.subr.bf16.mxu0 0
    %371 = vmatpush1.bf16.msra.mxu0 0
    %372 = vmatprep.subr.bf16.mxu0 0
    %373 = vmatpush1.bf16.msra.mxu0 0
    %374 = vmatprep.subr.bf16.mxu0 0
    %375 = vmatpush1.bf16.msra.mxu0 0
    %376 = vmatprep.subr.bf16.mxu0 0
    %377 = vmatpush1.bf16.msra.mxu0 0
    %378 = vmatprep.subr.bf16.mxu0 0
    %379 = vmatpush1.bf16.msra.mxu0 %v198
    %380 = vmatprep.subr.bf16.mxu0 0
    %381 = vmatpush1.bf16.msra.mxu0 %v197
    %382 = vmatprep.subr.bf16.mxu0 0
    %383 = vmatpush2.bf16.msra.mxu0 0
    %384 = vmatprep.subr.bf16.mxu0 0
    %385 = vmatpush2.bf16.msra.mxu0 0
    %386 = vmatprep.subr.bf16.mxu0 0
    %387 = vmatpush2.bf16.msra.mxu0 0
    %388 = vmatprep.subr.bf16.mxu0 0
    %389 = vmatpush2.bf16.msra.mxu0 0
    %390 = vmatprep.subr.bf16.mxu0 0
    %391 = vmatpush2.bf16.msra.mxu0 0
    %392 = vmatprep.subr.bf16.mxu0 0
    %393 = vmatpush2.bf16.msra.mxu0 0
    %394 = vmatprep.subr.bf16.mxu0 0
    %395 = vmatpush2.bf16.msra.mxu0 0
    %396 = vmatprep.subr.bf16.mxu0 0
    %397 = vmatpush2.bf16.msra.mxu0 0
    %398 = vmatprep.mubr.bf16.mxu0 0
    %399 = vmatmul.mubr.bf16.gmra.mxu0 %v364
    %v400 = vpop.f32.mrf.mxu0
    %v401 = vadd.f32 0.0, %v400
    %v402 = vpop.f32.mrf.mxu0
    %v403 = vpop.f32.mrf.mxu0
    %v404 = vpop.f32.mrf.mxu0
    %405 = vdwg.mxu0
    %v406 = vadd.f32 %v358, %v401
    %v407 = vxor.u32 %v406, 2147483648
    %v408 = vmul.f32 %v407, 1.442695
    %v409 = vpow.pop %v408
    %v410 = vadd.f32 %v409, 1.0
    %v411 = vrcp.pop %v410
    %v412 = vmul.f32 1.0, %v411
    %v413 = vtanh.pop %v406
    %v414 = vmul.f32 %v412, %v345
    %416 = vrot.lane.b32.xlu0 %v413, 64
    %v417 = vpop.permute.xlu0 %416
    %v419 = vmul.f32 %v412, %v417
    %421 = vrot.lane.b32.xlu0 %v419, 32
    %v422 = vpop.permute.xlu0 %421
    %v424 = vadd.f32 %v414, %v422
    %v425 = vtanh.pop %v424
    %427 = vrot.lane.b32.xlu0 %v425, 64
    %v428 = vpop.permute.xlu0 %427
    %v430 = vmul.f32 %v412, %v428
    %432 = vrot.lane.b32.xlu0 %v430, 96
    %v433 = vpop.permute.xlu0 %432
    %vm435 = vcmask 785920
    %436 = vst.msk [vmem:[#allocation5] sm:$0xff] %vm435, %v433
    %v437 = vld [vmem:[#allocation2 + $0x18] sm:$0xff]
    %v438 = vpack.c.bf16 %v430, %v430
    %440 = vrot.lane.b32.xlu0 %v438, 32
    %v441 = vpop.permute.xlu0 %440
    %v443 = vsel %vm201, %v441, 0
    %445 = vmatprep.subr.bf16.mxu0 0
    %446 = vmatpush1.bf16.msra.mxu0 0
    %447 = vmatprep.subr.bf16.mxu0 0
    %448 = vmatpush1.bf16.msra.mxu0 0
    %449 = vmatprep.subr.bf16.mxu0 0
    %450 = vmatpush1.bf16.msra.mxu0 0
    %451 = vmatprep.subr.bf16.mxu0 0
    %452 = vmatpush1.bf16.msra.mxu0 0
    %453 = vmatprep.subr.bf16.mxu0 0
    %454 = vmatpush1.bf16.msra.mxu0 0
    %455 = vmatprep.subr.bf16.mxu0 0
    %456 = vmatpush1.bf16.msra.mxu0 0
    %457 = vmatprep.subr.bf16.mxu0 0
    %458 = vmatpush1.bf16.msra.mxu0 %v198
    %459 = vmatprep.subr.bf16.mxu0 0
    %460 = vmatpush1.bf16.msra.mxu0 %v197
    %461 = vmatprep.subr.bf16.mxu0 0
    %462 = vmatpush2.bf16.msra.mxu0 0
    %463 = vmatprep.subr.bf16.mxu0 0
    %464 = vmatpush2.bf16.msra.mxu0 0
    %465 = vmatprep.subr.bf16.mxu0 0
    %466 = vmatpush2.bf16.msra.mxu0 0
    %467 = vmatprep.subr.bf16.mxu0 0
    %468 = vmatpush2.bf16.msra.mxu0 0
    %469 = vmatprep.subr.bf16.mxu0 0
    %470 = vmatpush2.bf16.msra.mxu0 0
    %471 = vmatprep.subr.bf16.mxu0 0
    %472 = vmatpush2.bf16.msra.mxu0 0
    %473 = vmatprep.subr.bf16.mxu0 0
    %474 = vmatpush2.bf16.msra.mxu0 0
    %475 = vmatprep.subr.bf16.mxu0 0
    %476 = vmatpush2.bf16.msra.mxu0 0
    %477 = vmatprep.mubr.bf16.mxu0 0
    %478 = vmatmul.mubr.bf16.gmra.mxu0 %v443
    %v479 = vpop.f32.mrf.mxu0
    %v480 = vadd.f32 0.0, %v479
    %v481 = vpop.f32.mrf.mxu0
    %v482 = vpop.f32.mrf.mxu0
    %v483 = vpop.f32.mrf.mxu0
    %484 = vdwg.mxu0
    %v485 = vadd.f32 %v437, %v480
    %v486 = vxor.u32 %v485, 2147483648
    %v487 = vmul.f32 %v486, 1.442695
    %v488 = vpow.pop %v487
    %v489 = vadd.f32 %v488, 1.0
    %v490 = vrcp.pop %v489
    %v491 = vmul.f32 1.0, %v490
    %v492 = vtanh.pop %v485
    %v493 = vmul.f32 %v491, %v424
    %495 = vrot.lane.b32.xlu0 %v492, 64
    %v496 = vpop.permute.xlu0 %495
    %v498 = vmul.f32 %v491, %v496
    %500 = vrot.lane.b32.xlu0 %v498, 32
    %v501 = vpop.permute.xlu0 %500
    %v503 = vadd.f32 %v493, %v501
    %v504 = vtanh.pop %v503
    %506 = vrot.lane.b32.xlu0 %v504, 64
    %v507 = vpop.permute.xlu0 %506
    %v509 = vmul.f32 %v491, %v507
    %vm510 = vcmask 1048320
    %511 = vst.msk [vmem:[#allocation5] sm:$0xff] %vm510, %v509
    %v512 = vld [vmem:[#allocation2 + $0x20] sm:$0xff]
    %v513 = vpack.c.bf16 %v509, %v509
    %515 = vrot.lane.b32.xlu0 %v513, 32
    %v516 = vpop.permute.xlu0 %515
    %v518 = vsel %vm201, %v516, 0
    %520 = vmatprep.subr.bf16.mxu0 0
    %521 = vmatpush1.bf16.msra.mxu0 0
    %522 = vmatprep.subr.bf16.mxu0 0
    %523 = vmatpush1.bf16.msra.mxu0 0
    %524 = vmatprep.subr.bf16.mxu0 0
    %525 = vmatpush1.bf16.msra.mxu0 0
    %526 = vmatprep.subr.bf16.mxu0 0
    %527 = vmatpush1.bf16.msra.mxu0 0
    %528 = vmatprep.subr.bf16.mxu0 0
    %529 = vmatpush1.bf16.msra.mxu0 0
    %530 = vmatprep.subr.bf16.mxu0 0
    %531 = vmatpush1.bf16.msra.mxu0 0
    %532 = vmatprep.subr.bf16.mxu0 0
    %533 = vmatpush1.bf16.msra.mxu0 %v198
    %534 = vmatprep.subr.bf16.mxu0 0
    %535 = vmatpush1.bf16.msra.mxu0 %v197
    %536 = vmatprep.subr.bf16.mxu0 0
    %537 = vmatpush2.bf16.msra.mxu0 0
    %538 = vmatprep.subr.bf16.mxu0 0
    %539 = vmatpush2.bf16.msra.mxu0 0
    %540 = vmatprep.subr.bf16.mxu0 0
    %541 = vmatpush2.bf16.msra.mxu0 0
    %542 = vmatprep.subr.bf16.mxu0 0
    %543 = vmatpush2.bf16.msra.mxu0 0
    %544 = vmatprep.subr.bf16.mxu0 0
    %545 = vmatpush2.bf16.msra.mxu0 0
    %546 = vmatprep.subr.bf16.mxu0 0
    %547 = vmatpush2.bf16.msra.mxu0 0
    %548 = vmatprep.subr.bf16.mxu0 0
    %549 = vmatpush2.bf16.msra.mxu0 0
    %550 = vmatprep.subr.bf16.mxu0 0
    %551 = vmatpush2.bf16.msra.mxu0 0
    %552 = vmatprep.mubr.bf16.mxu0 0
    %553 = vmatmul.mubr.bf16.gmra.mxu0 %v518
    %v554 = vpop.f32.mrf.mxu0
    %v555 = vadd.f32 0.0, %v554
    %v556 = vpop.f32.mrf.mxu0
    %v557 = vpop.f32.mrf.mxu0
    %v558 = vpop.f32.mrf.mxu0
    %559 = vdwg.mxu0
    %v560 = vadd.f32 %v512, %v555
    %v561 = vxor.u32 %v560, 2147483648
    %v562 = vmul.f32 %v561, 1.442695
    %v563 = vpow.pop %v562
    %v564 = vadd.f32 %v563, 1.0
    %v565 = vrcp.pop %v564
    %v566 = vmul.f32 1.0, %v565
    %v567 = vtanh.pop %v560
    %v568 = vmul.f32 %v566, %v503
    %570 = vrot.lane.b32.xlu0 %v567, 64
    %v571 = vpop.permute.xlu0 %570
    %v573 = vmul.f32 %v566, %v571
    %575 = vrot.lane.b32.xlu0 %v573, 32
    %v576 = vpop.permute.xlu0 %575
    %v578 = vadd.f32 %v568, %v576
    %v579 = vtanh.pop %v578
    %581 = vrot.lane.b32.xlu0 %v579, 64
    %v582 = vpop.permute.xlu0 %581
    %v584 = vmul.f32 %v566, %v582
    %586 = vrot.lane.b32.xlu0 %v584, 32
    %v587 = vpop.permute.xlu0 %586
    %589 = vst.msk [vmem:[#allocation5 + $0x8] sm:$0xff] %vm201, %v587
    %v590 = vld [vmem:[#allocation2 + $0x28] sm:$0xff]
    %v591 = vpack.c.bf16 %v584, %v584
    %593 = vrot.lane.b32.xlu0 %v591, 32
    %v594 = vpop.permute.xlu0 %593
    %v596 = vsel %vm201, %v594, 0
    %598 = vmatprep.subr.bf16.mxu0 0
    %599 = vmatpush1.bf16.msra.mxu0 0
    %600 = vmatprep.subr.bf16.mxu0 0
    %601 = vmatpush1.bf16.msra.mxu0 0
    %602 = vmatprep.subr.bf16.mxu0 0
    %603 = vmatpush1.bf16.msra.mxu0 0
    %604 = vmatprep.subr.bf16.mxu0 0
    %605 = vmatpush1.bf16.msra.mxu0 0
    %606 = vmatprep.subr.bf16.mxu0 0
    %607 = vmatpush1.bf16.msra.mxu0 0
    %608 = vmatprep.subr.bf16.mxu0 0
    %609 = vmatpush1.bf16.msra.mxu0 0
    %610 = vmatprep.subr.bf16.mxu0 0
    %611 = vmatpush1.bf16.msra.mxu0 %v198
    %612 = vmatprep.subr.bf16.mxu0 0
    %613 = vmatpush1.bf16.msra.mxu0 %v197
    %614 = vmatprep.subr.bf16.mxu0 0
    %615 = vmatpush2.bf16.msra.mxu0 0
    %616 = vmatprep.subr.bf16.mxu0 0
    %617 = vmatpush2.bf16.msra.mxu0 0
    %618 = vmatprep.subr.bf16.mxu0 0
    %619 = vmatpush2.bf16.msra.mxu0 0
    %620 = vmatprep.subr.bf16.mxu0 0
    %621 = vmatpush2.bf16.msra.mxu0 0
    %622 = vmatprep.subr.bf16.mxu0 0
    %623 = vmatpush2.bf16.msra.mxu0 0
    %624 = vmatprep.subr.bf16.mxu0 0
    %625 = vmatpush2.bf16.msra.mxu0 0
    %626 = vmatprep.subr.bf16.mxu0 0
    %627 = vmatpush2.bf16.msra.mxu0 0
    %628 = vmatprep.subr.bf16.mxu0 0
    %629 = vmatpush2.bf16.msra.mxu0 0
    %630 = vmatprep.mubr.bf16.mxu0 0
    %631 = vmatmul.mubr.bf16.gmra.mxu0 %v596
    %v632 = vpop.f32.mrf.mxu0
    %v633 = vadd.f32 0.0, %v632
    %v634 = vpop.f32.mrf.mxu0
    %v635 = vpop.f32.mrf.mxu0
    %v636 = vpop.f32.mrf.mxu0
    %637 = vdwg.mxu0
    %v638 = vadd.f32 %v590, %v633
    %v639 = vxor.u32 %v638, 2147483648
    %v640 = vmul.f32 %v639, 1.442695
    %v641 = vpow.pop %v640
    %v642 = vadd.f32 %v641, 1.0
    %v643 = vrcp.pop %v642
    %v644 = vmul.f32 1.0, %v643
    %v645 = vtanh.pop %v638
    %v646 = vmul.f32 %v644, %v578
    %648 = vrot.lane.b32.xlu0 %v645, 64
    %v649 = vpop.permute.xlu0 %648
    %v651 = vmul.f32 %v644, %v649
    %653 = vrot.lane.b32.xlu0 %v651, 32
    %v654 = vpop.permute.xlu0 %653
    %v656 = vadd.f32 %v646, %v654
    %v657 = vtanh.pop %v656
    %659 = vrot.lane.b32.xlu0 %v657, 64
    %v660 = vpop.permute.xlu0 %659
    %v662 = vmul.f32 %v644, %v660
    %664 = vrot.lane.b32.xlu0 %v662, 64
    %v665 = vpop.permute.xlu0 %664
    %667 = vst.msk [vmem:[#allocation5 + $0x8] sm:$0xff] %vm356, %v665
    %v668 = vld [vmem:[#allocation2 + $0x30] sm:$0xff]
    %v669 = vpack.c.bf16 %v662, %v662
    %671 = vrot.lane.b32.xlu0 %v669, 32
    %v672 = vpop.permute.xlu0 %671
    %v674 = vsel %vm201, %v672, 0
    %676 = vmatprep.subr.bf16.mxu0 0
    %677 = vmatpush1.bf16.msra.mxu0 0
    %678 = vmatprep.subr.bf16.mxu0 0
    %679 = vmatpush1.bf16.msra.mxu0 0
    %680 = vmatprep.subr.bf16.mxu0 0
    %681 = vmatpush1.bf16.msra.mxu0 0
    %682 = vmatprep.subr.bf16.mxu0 0
    %683 = vmatpush1.bf16.msra.mxu0 0
    %684 = vmatprep.subr.bf16.mxu0 0
    %685 = vmatpush1.bf16.msra.mxu0 0
    %686 = vmatprep.subr.bf16.mxu0 0
    %687 = vmatpush1.bf16.msra.mxu0 0
    %688 = vmatprep.subr.bf16.mxu0 0
    %689 = vmatpush1.bf16.msra.mxu0 %v198
    %690 = vmatprep.subr.bf16.mxu0 0
    %691 = vmatpush1.bf16.msra.mxu0 %v197
    %692 = vmatprep.subr.bf16.mxu0 0
    %693 = vmatpush2.bf16.msra.mxu0 0
    %694 = vmatprep.subr.bf16.mxu0 0
    %695 = vmatpush2.bf16.msra.mxu0 0
    %696 = vmatprep.subr.bf16.mxu0 0
    %697 = vmatpush2.bf16.msra.mxu0 0
    %698 = vmatprep.subr.bf16.mxu0 0
    %699 = vmatpush2.bf16.msra.mxu0 0
    %700 = vmatprep.subr.bf16.mxu0 0
    %701 = vmatpush2.bf16.msra.mxu0 0
    %702 = vmatprep.subr.bf16.mxu0 0
    %703 = vmatpush2.bf16.msra.mxu0 0
    %704 = vmatprep.subr.bf16.mxu0 0
    %705 = vmatpush2.bf16.msra.mxu0 0
    %706 = vmatprep.subr.bf16.mxu0 0
    %707 = vmatpush2.bf16.msra.mxu0 0
    %708 = vmatprep.mubr.bf16.mxu0 0
    %709 = vmatmul.mubr.bf16.gmra.mxu0 %v674
    %v710 = vpop.f32.mrf.mxu0
    %v711 = vadd.f32 0.0, %v710
    %v712 = vpop.f32.mrf.mxu0
    %v713 = vpop.f32.mrf.mxu0
    %v714 = vpop.f32.mrf.mxu0
    %715 = vdwg.mxu0
    %v716 = vadd.f32 %v668, %v711
    %v717 = vxor.u32 %v716, 2147483648
    %v718 = vmul.f32 %v717, 1.442695
    %v719 = vpow.pop %v718
    %v720 = vadd.f32 %v719, 1.0
    %v721 = vrcp.pop %v720
    %v722 = vmul.f32 1.0, %v721
    %v723 = vtanh.pop %v716
    %v724 = vmul.f32 %v722, %v656
    %726 = vrot.lane.b32.xlu0 %v723, 64
    %v727 = vpop.permute.xlu0 %726
    %v729 = vmul.f32 %v722, %v727
    %731 = vrot.lane.b32.xlu0 %v729, 32
    %v732 = vpop.permute.xlu0 %731
    %v734 = vadd.f32 %v724, %v732
    %v735 = vtanh.pop %v734
    %737 = vrot.lane.b32.xlu0 %v735, 64
    %v738 = vpop.permute.xlu0 %737
    %v740 = vmul.f32 %v722, %v738
    %742 = vrot.lane.b32.xlu0 %v740, 96
    %v743 = vpop.permute.xlu0 %742
    %745 = vst.msk [vmem:[#allocation5 + $0x8] sm:$0xff] %vm435, %v743
    %v746 = vld [vmem:[#allocation2 + $0x38] sm:$0xff]
    %v747 = vpack.c.bf16 %v740, %v740
    %749 = vrot.lane.b32.xlu0 %v747, 32
    %v750 = vpop.permute.xlu0 %749
    %v752 = vsel %vm201, %v750, 0
    %754 = vmatprep.subr.bf16.mxu0 0
    %755 = vmatpush1.bf16.msra.mxu0 0
    %756 = vmatprep.subr.bf16.mxu0 0
    %757 = vmatpush1.bf16.msra.mxu0 0
    %758 = vmatprep.subr.bf16.mxu0 0
    %759 = vmatpush1.bf16.msra.mxu0 0
    %760 = vmatprep.subr.bf16.mxu0 0
    %761 = vmatpush1.bf16.msra.mxu0 0
    %762 = vmatprep.subr.bf16.mxu0 0
    %763 = vmatpush1.bf16.msra.mxu0 0
    %764 = vmatprep.subr.bf16.mxu0 0
    %765 = vmatpush1.bf16.msra.mxu0 0
    %766 = vmatprep.subr.bf16.mxu0 0
    %767 = vmatpush1.bf16.msra.mxu0 %v198
    %768 = vmatprep.subr.bf16.mxu0 0
    %769 = vmatpush1.bf16.msra.mxu0 %v197
    %770 = vmatprep.subr.bf16.mxu0 0
    %771 = vmatpush2.bf16.msra.mxu0 0
    %772 = vmatprep.subr.bf16.mxu0 0
    %773 = vmatpush2.bf16.msra.mxu0 0
    %774 = vmatprep.subr.bf16.mxu0 0
    %775 = vmatpush2.bf16.msra.mxu0 0
    %776 = vmatprep.subr.bf16.mxu0 0
    %777 = vmatpush2.bf16.msra.mxu0 0
    %778 = vmatprep.subr.bf16.mxu0 0
    %779 = vmatpush2.bf16.msra.mxu0 0
    %780 = vmatprep.subr.bf16.mxu0 0
    %781 = vmatpush2.bf16.msra.mxu0 0
    %782 = vmatprep.subr.bf16.mxu0 0
    %783 = vmatpush2.bf16.msra.mxu0 0
    %784 = vmatprep.subr.bf16.mxu0 0
    %785 = vmatpush2.bf16.msra.mxu0 0
    %786 = vmatprep.mubr.bf16.mxu0 0
    %787 = vmatmul.mubr.bf16.gmra.mxu0 %v752
    %v788 = vpop.f32.mrf.mxu0
    %v789 = vadd.f32 0.0, %v788
    %v790 = vpop.f32.mrf.mxu0
    %v791 = vpop.f32.mrf.mxu0
    %v792 = vpop.f32.mrf.mxu0
    %793 = vdwg.mxu0
    %v794 = vadd.f32 %v746, %v789
    %v795 = vxor.u32 %v794, 2147483648
    %v796 = vmul.f32 %v795, 1.442695
    %v797 = vpow.pop %v796
    %v798 = vadd.f32 %v797, 1.0
    %v799 = vrcp.pop %v798
    %v800 = vmul.f32 1.0, %v799
    %v801 = vtanh.pop %v794
    %v802 = vmul.f32 %v800, %v734
    %804 = vrot.lane.b32.xlu0 %v801, 64
    %v805 = vpop.permute.xlu0 %804
    %v807 = vmul.f32 %v800, %v805
    %809 = vrot.lane.b32.xlu0 %v807, 32
    %v810 = vpop.permute.xlu0 %809
    %v812 = vadd.f32 %v802, %v810
    %v813 = vtanh.pop %v812
    %815 = vrot.lane.b32.xlu0 %v813, 64
    %v816 = vpop.permute.xlu0 %815
    %v818 = vmul.f32 %v800, %v816
    %819 = vst.msk [vmem:[#allocation5 + $0x8] sm:$0xff] %vm510, %v818
    %821 = vrot.lane.b32.xlu0 %v818, 32
    %v822 = vpop.permute.xlu0 %821
    %824 = vst.msk [vmem:[#allocation3] sm:$0xff] %vm201, %v822
    %826 = vrot.lane.b32.xlu0 %v812, 96
    %v827 = vpop.permute.xlu0 %826
    %829 = vst.msk [vmem:[#allocation4] sm:$0xff] %vm201, %v827
    // Predicated region
    $region22: #{tpu_custom_call.1} parent=1 // pred_check
      _
    $region23: #{tpu_custom_call.1} parent=1 // pred_check_branch
      %831 = sbr.rel (0) target = $region25
    $region24: #{tpu_custom_call.1} parent=1 // pred_region
      %s833 = ssub.s32 256, 256
      %834 = vsyncadd [#allocation6], %s833
      %s836 = sshll.u32 [#allocation5], 4
      %s837 = int_to_ptr.vmem [resolvable:$true] %s836
      %839 = dma.vmem_to_hbm [thread:$0]  %s837, 256, %s4, [#allocation6]
    $region25: #{tpu_custom_call.1} parent=1 // pred_fallthru
      _
    // Predicated region
    $region26: #{tpu_custom_call.1} parent=1 // pred_check
      _
    $region27: #{tpu_custom_call.1} parent=1 // pred_check_branch
      %841 = sbr.rel (0) target = $region29
    $region28: #{tpu_custom_call.1} parent=1 // pred_region
      %842 = dma.done [#allocation6], 256
    $region29: #{tpu_custom_call.1} parent=1 // pred_fallthru
      _
    %843 = vsyncpa [#allocation6], 1

</llo_original>
